<compile_context>
chip_gen: v5e
topology: v5e:2x2
jax: 0.10.0
libtpu: 0.0.40
codegen_flags: <defaults>
</compile_context>

<pallas_src>
import functools

import jax
import jax.numpy as jnp
from jax import lax
from jax.experimental import pallas as pl
from jax.experimental.pallas import tpu as pltpu


def _ce_kernel(xs_ref, xe_ref, lab_ref, out_ref, acc_s_ref, acc_e_ref,
               *, batch_size, row_tile, tiles_per_split):
    # xs_ref:  (TB, C)  logits_start tile, native dtype
    # xe_ref:  (TB, C)  logits_end   tile, native dtype
    # lab_ref: (TB, 2)  int32 targets: col 0 = start, col 1 = end
    # out_ref: (1, 2)   f32 per-split raw NLL sums (written once, last inner step)
    # acc_*:   (1, 1)   f32 VMEM scratch accumulating raw NLL sums across batch tiles
    s = pl.program_id(0)          # megacore split axis ("parallel")
    b = pl.program_id(1)          # batch-tile axis ("arbitrary", carries accumulators)
    nbt = pl.num_programs(1)

    @pl.when(b == 0)
    def _init():
        acc_s_ref[...] = jnp.zeros_like(acc_s_ref)
        acc_e_ref[...] = jnp.zeros_like(acc_e_ref)

    # Logical (unclamped) row offset of this tile; rows >= batch_size (partial last tile,
    # or duplicated clamped tiles when the tile count is odd) are masked to zero below.
    row0 = (s * tiles_per_split + b) * row_tile
    lab = lab_ref[...]                                           # (TB, 2) int32

    def path_nll_sum(x_ref, labels_col):
        xn = x_ref[...]                                          # native dtype (bf16 stays bf16)
        TB, C = xn.shape
        # Row max and target-logit extraction are exact in the native dtype
        # (compare/select + single-nonzero masked sum): half the vreg traffic for bf16.
        m = jnp.max(xn, axis=1, keepdims=True).astype(jnp.float32)          # (TB, 1)
        iota = lax.broadcasted_iota(jnp.int32, (TB, C), 1)
        tgt = iota == labels_col                                            # (TB, C)
        x_t = jnp.sum(jnp.where(tgt, xn, 0), axis=1,
                      keepdims=True).astype(jnp.float32)                    # (TB, 1)

        # Single exp sweep in f32 (numerically stable logsumexp).
        e = jnp.exp(xn.astype(jnp.float32) - m)                             # (TB, C)
        s1 = jnp.sum(e, axis=1, keepdims=True)                              # (TB, 1)
        lse1 = jnp.log(s1)

        # Second log_softmax (as applied by F.cross_entropy on log-probs):
        # sum(exp(ls1)) == s1 / s1 up to rounding, so the correction collapses to a
        # per-row scalar -- no second (TB, C) multiply or cross-lane reduction.
        lse2 = jnp.log(s1 * pl.reciprocal(s1, approx=False))                # ~= 0

        # nll = -(x_t - m - lse1 - lse2)
        nll = m + lse1 + lse2 - x_t                                         # (TB, 1)

        rows = row0 + lax.broadcasted_iota(jnp.int32, (TB, 1), 0)
        nll = jnp.where(rows < batch_size, nll, 0.0)
        return jnp.sum(nll)

    acc_s_ref[...] += path_nll_sum(xs_ref, lab[:, 0:1])
    acc_e_ref[...] += path_nll_sum(xe_ref, lab[:, 1:2])

    @pl.when(b == nbt - 1)
    def _finalize():
        out_ref[...] = jnp.concatenate([acc_s_ref[...], acc_e_ref[...]], axis=1)


def _vmem_capacity_bytes():
    try:
        return int(pltpu.get_tpu_info().vmem_capacity_bytes)
    except Exception:
        return 64 * 1024 * 1024   # conservative fallback (v7x physical VMEM per TC)


def _pick_row_tile(batch, num_classes, in_itemsize, vmem_budget_bytes):
    # Block second-to-last dim must be a multiple of 8 or equal the full dim.
    if batch <= 8:
        return batch
    # Per-row VMEM cost:
    #   2 paths * 2 pipeline buffers of native-dtype logits blocks          -> 4 * C * isz
    #   ~4 f32-sized (TB, C) in-kernel intermediates (cast, exp, iota, sel) -> 16 * C
    #   labels (2 int32, double buffered)                                   -> 16
    bytes_per_row = num_classes * (4 * in_itemsize + 16) + 16
    max_rows = max(8, vmem_budget_bytes // bytes_per_row)
    tb = min(batch, 1024, max_rows)
    return max(8, (tb // 8) * 8)


def cross_entropy_pallas(logits_start, logits_end, labels, *, row_tile=None):
    assert logits_start.shape == logits_end.shape
    B, C = logits_start.shape
    labels = labels.astype(jnp.int32)                          # (B, 2)

    vmem_cap = _vmem_capacity_bytes()
    tile_budget = int(vmem_cap * 0.5)                          # leave headroom for compiler
    vmem_limit = int(vmem_cap * 0.75)                          # raise scoped-VMEM default

    tb = row_tile if row_tile is not None else _pick_row_tile(
        B, C, logits_start.dtype.itemsize, tile_budget)

    total_tiles = pl.cdiv(B, tb)
    n_split = 2 if total_tiles >= 2 else 1                     # megacore split (v7x: 2 TCs)
    nbt = pl.cdiv(total_tiles, n_split)

    # Clamp block index so duplicated tail tiles (odd tile counts) stay in-bounds; their
    # rows compute as >= B and are masked to zero inside the kernel.
    def row_block(s, b):
        return jnp.minimum(s * nbt + b, total_tiles - 1)

    logits_spec = pl.BlockSpec((tb, C), lambda s, b: (row_block(s, b), 0))
    labels_spec = pl.BlockSpec((tb, 2), lambda s, b: (row_block(s, b), 0))

    kernel = functools.partial(_ce_kernel, batch_size=B, row_tile=tb, tiles_per_split=nbt)

    out = pl.pallas_call(
        kernel,
        out_shape=jax.ShapeDtypeStruct((n_split, 1, 2), jnp.float32),
        grid=(n_split, nbt),
        in_specs=[logits_spec, logits_spec, labels_spec],
        out_specs=pl.BlockSpec((None, 1, 2), lambda s, b: (s, 0, 0)),
        scratch_shapes=[pltpu.VMEM((1, 1), jnp.float32),
                        pltpu.VMEM((1, 1), jnp.float32)],
        compiler_params=pltpu.CompilerParams(
            # outer split axis uses both TensorCores on v7x; inner batch-tile axis
            # carries the accumulators -> "arbitrary".
            dimension_semantics=("parallel", "arbitrary"),
            vmem_limit_bytes=vmem_limit,
        ),
    )(logits_start, logits_end, labels)

    totals = jnp.sum(out[:, 0, :], axis=0)                     # (2,) raw NLL sums
    loss_start = totals[0] / B
    loss_end = totals[1] / B
    return loss_start + loss_end / 2.0


def _log_softmax_rows(z):
    m = jnp.max(z, axis=1, keepdims=True)
    y = z - m
    return y - jnp.log(jnp.sum(jnp.exp(y), axis=1, keepdims=True))


def cross_entropy_ref(logits_start, logits_end, labels):
    # pure-JAX reference of the exact PyTorch semantics, for verification
    def f(logits, lab):
        ls2 = _log_softmax_rows(_log_softmax_rows(logits.astype(jnp.float32)))
        nll = -jnp.take_along_axis(ls2, lab[:, None].astype(jnp.int32), axis=1)[:, 0]
        return jnp.mean(nll)

    return f(logits_start, labels[:, 0]) + f(logits_end, labels[:, 1]) / 2.0


if __name__ == "__main__":
    key = jax.random.PRNGKey(0)
    k1, k2, k3 = jax.random.split(key, 3)

    # Small demo shape (single tile); realistic B/C exercise the pipelined path below.
    B, C = 8, 128
    logits_start = jax.random.normal(k1, (B, C), dtype=jnp.float32)
    logits_end = jax.random.normal(k2, (B, C), dtype=jnp.float32)
    labels = jax.random.randint(k3, (B, 2), 0, C, dtype=jnp.int32)

    loss = jax.block_until_ready(cross_entropy_pallas(logits_start, logits_end, labels))
    ref = cross_entropy_ref(logits_start, logits_end, labels)
    assert jnp.allclose(loss, ref, rtol=1e-5, atol=1e-5), (loss, ref)

    # Multi-tile / megacore-split / partial-last-tile / bf16 exercise (forced small tile).
    k4, k5, k6 = jax.random.split(jax.random.PRNGKey(1), 3)
    B2, C2 = 20, 256
    ls2 = jax.random.normal(k4, (B2, C2), dtype=jnp.bfloat16)
    le2 = jax.random.normal(k5, (B2, C2), dtype=jnp.bfloat16)
    lab2 = jax.random.randint(k6, (B2, 2), 0, C2, dtype=jnp.int32)
    loss2 = jax.block_until_ready(cross_entropy_pallas(ls2, le2, lab2, row_tile=8))
    ref2 = cross_entropy_ref(ls2, le2, lab2)
    assert jnp.allclose(loss2, ref2, rtol=1e-4, atol=1e-4), (loss2, ref2)

    print("KERNEL_OK")
</pallas_src>

<mosaic_0001>
module attributes {stable_mosaic.version = 11 : i64} {
  func.func @_ce_kernel(%arg0: i32, %arg1: i32, %arg2: memref<8x128xf32, #tpu.memory_space<vmem>>, %arg3: memref<8x128xf32, #tpu.memory_space<vmem>>, %arg4: memref<8x2xi32, #tpu.memory_space<vmem>>, %arg5: memref<1x1x2xf32, #tpu.memory_space<vmem>>, %arg6: memref<1x1xf32, #tpu.memory_space<vmem>>, %arg7: memref<1x1xf32, #tpu.memory_space<vmem>>) attributes {dimension_semantics = [#tpu.dimension_semantics<parallel>, #tpu.dimension_semantics<arbitrary>], iteration_bounds = array<i64: 1, 1>, scalar_prefetch = 0 : i64, scratch_operands = 2 : i64, tpu.core_type = #tpu.core_type<tc>, window_params = [{transform_indices = @transform_0, window_bounds = array<i64: 8, 128>}, {transform_indices = @transform_1, window_bounds = array<i64: 8, 128>}, {transform_indices = @transform_2, window_bounds = array<i64: 8, 2>}, {transform_indices = @transform_3, window_bounds = array<i64: 1, 1, 2>}]} {
    %c0_i32 = arith.constant 0 : i32
    %0 = arith.cmpi eq, %arg1, %c0_i32 : i32
    %1 = arith.extui %0 : i1 to i32
    %c0_i32_0 = arith.constant 0 : i32
    %2 = arith.cmpi ne, %1, %c0_i32_0 : i32
    scf.if %2 {
      %cst_29 = arith.constant 0.000000e+00 : f32
      %88 = vector.broadcast %cst_29 : f32 to vector<1x1xf32>
      %c0_30 = arith.constant 0 : index
      %c0_31 = arith.constant 0 : index
      %89 = vector.load %arg6[%c0_30, %c0_31] : memref<1x1xf32, #tpu.memory_space<vmem>>, vector<1x1xf32>
      tpu.vector_store %arg6[%c0_30, %c0_31], %88 {strides = array<i32>} : memref<1x1xf32, #tpu.memory_space<vmem>>, vector<1x1xf32>,
      %cst_32 = arith.constant 0.000000e+00 : f32
      %90 = vector.broadcast %cst_32 : f32 to vector<1x1xf32>
      %c0_33 = arith.constant 0 : index
      %c0_34 = arith.constant 0 : index
      %91 = vector.load %arg7[%c0_33, %c0_34] : memref<1x1xf32, #tpu.memory_space<vmem>>, vector<1x1xf32>
      tpu.vector_store %arg7[%c0_33, %c0_34], %90 {strides = array<i32>} : memref<1x1xf32, #tpu.memory_space<vmem>>, vector<1x1xf32>,
    } else {
    }
    %c1_i32 = arith.constant 1 : i32
    %3 = arith.muli %arg0, %c1_i32 : i32
    %4 = arith.addi %3, %arg1 : i32
    %c8_i32 = arith.constant 8 : i32
    %5 = arith.muli %4, %c8_i32 : i32
    %c0 = arith.constant 0 : index
    %c0_1 = arith.constant 0 : index
    %6 = vector.load %arg4[%c0, %c0_1] : memref<8x2xi32, #tpu.memory_space<vmem>>, vector<8x2xi32>
    %c0_2 = arith.constant 0 : index
    %c0_3 = arith.constant 0 : index
    %7 = vector.load %arg6[%c0_2, %c0_3] : memref<1x1xf32, #tpu.memory_space<vmem>>, vector<1x1xf32>
    %8 = vector.extract_strided_slice %6 {offsets = [0, 0], sizes = [8, 1], strides = [1, 1]} : vector<8x2xi32> to vector<8x1xi32>
    %c0_4 = arith.constant 0 : index
    %c0_5 = arith.constant 0 : index
    %9 = vector.load %arg2[%c0_4, %c0_5] : memref<8x128xf32, #tpu.memory_space<vmem>>, vector<8x128xf32>
    %cst = arith.constant dense<0xFF800000> : vector<8xf32>
    %10 = vector.multi_reduction <maximumf>, %9, %cst [1] : vector<8x128xf32> to vector<8xf32>
    %11 = vector.shape_cast %10 : vector<8xf32> to vector<8x1xf32>
    %12 = tpu.iota {dimensions = array<i32: 1>} : vector<8x128xi32>
    %13 = vector.broadcast %8 : vector<8x1xi32> to vector<8x128xi32>
    %14 = arith.cmpi eq, %12, %13 : vector<8x128xi32>
    %c0_i32_6 = arith.constant 0 : i32
    %15 = arith.sitofp %c0_i32_6 : i32 to f32
    %16 = vector.broadcast %15 : f32 to vector<8x128xf32>
    %17 = arith.select %14, %9, %16 : vector<8x128xi1>, vector<8x128xf32>
    %cst_7 = arith.constant dense<0.000000e+00> : vector<8xf32>
    %18 = vector.multi_reduction <add>, %17, %cst_7 [1] : vector<8x128xf32> to vector<8xf32>
    %19 = vector.shape_cast %18 : vector<8xf32> to vector<8x1xf32>
    %20 = vector.broadcast %11 : vector<8x1xf32> to vector<8x128xf32>
    %21 = arith.subf %9, %20 : vector<8x128xf32>
    %22 = math.exp %21 : vector<8x128xf32>
    %cst_8 = arith.constant dense<0.000000e+00> : vector<8xf32>
    %23 = vector.multi_reduction <add>, %22, %cst_8 [1] : vector<8x128xf32> to vector<8xf32>
    %24 = vector.shape_cast %23 : vector<8xf32> to vector<8x1xf32>
    %25 = math.log %24 : vector<8x1xf32>
    %26 = tpu.reciprocal %24 : vector<8x1xf32> -> vector<8x1xf32>
    %27 = arith.mulf %24, %26 : vector<8x1xf32>
    %28 = math.log %27 : vector<8x1xf32>
    %29 = arith.addf %11, %25 : vector<8x1xf32>
    %30 = arith.addf %29, %28 : vector<8x1xf32>
    %31 = arith.subf %30, %19 : vector<8x1xf32>
    %32 = tpu.iota {dimensions = array<i32: 0>} : vector<8x1xi32>
    %33 = vector.broadcast %5 : i32 to vector<8x1xi32>
    %34 = arith.addi %33, %32 : vector<8x1xi32>
    %c8_i32_9 = arith.constant 8 : i32
    %35 = vector.broadcast %c8_i32_9 : i32 to vector<8x1xi32>
    %36 = arith.cmpi slt, %34, %35 : vector<8x1xi32>
    %cst_10 = arith.constant 0.000000e+00 : f32
    %37 = vector.broadcast %cst_10 : f32 to vector<8x1xf32>
    %38 = arith.select %36, %31, %37 : vector<8x1xi1>, vector<8x1xf32>
    %39 = vector.shape_cast %38 : vector<8x1xf32> to vector<1x8x1xf32>
    %cst_11 = arith.constant dense<0.000000e+00> : vector<1xf32>
    %40 = vector.multi_reduction <add>, %39, %cst_11 [1, 2] : vector<1x8x1xf32> to vector<1xf32>
    %41 = vector.shape_cast %40 : vector<1xf32> to vector<1x1x1xf32>
    %42 = vector.extract %41[0, 0, 0] : f32 from vector<1x1x1xf32>
    %43 = vector.broadcast %42 : f32 to vector<1x1xf32>
    %44 = arith.addf %7, %43 : vector<1x1xf32>
    %c0_12 = arith.constant 0 : index
    %c0_13 = arith.constant 0 : index
    %45 = vector.load %arg6[%c0_12, %c0_13] : memref<1x1xf32, #tpu.memory_space<vmem>>, vector<1x1xf32>
    tpu.vector_store %arg6[%c0_12, %c0_13], %44 {strides = array<i32>} : memref<1x1xf32, #tpu.memory_space<vmem>>, vector<1x1xf32>,
    %c0_14 = arith.constant 0 : index
    %c0_15 = arith.constant 0 : index
    %46 = vector.load %arg7[%c0_14, %c0_15] : memref<1x1xf32, #tpu.memory_space<vmem>>, vector<1x1xf32>
    %47 = vector.extract_strided_slice %6 {offsets = [0, 1], sizes = [8, 1], strides = [1, 1]} : vector<8x2xi32> to vector<8x1xi32>
    %c0_16 = arith.constant 0 : index
    %c0_17 = arith.constant 0 : index
    %48 = vector.load %arg3[%c0_16, %c0_17] : memref<8x128xf32, #tpu.memory_space<vmem>>, vector<8x128xf32>
    %cst_18 = arith.constant dense<0xFF800000> : vector<8xf32>
    %49 = vector.multi_reduction <maximumf>, %48, %cst_18 [1] : vector<8x128xf32> to vector<8xf32>
    %50 = vector.shape_cast %49 : vector<8xf32> to vector<8x1xf32>
    %51 = tpu.iota {dimensions = array<i32: 1>} : vector<8x128xi32>
    %52 = vector.broadcast %47 : vector<8x1xi32> to vector<8x128xi32>
    %53 = arith.cmpi eq, %51, %52 : vector<8x128xi32>
    %c0_i32_19 = arith.constant 0 : i32
    %54 = arith.sitofp %c0_i32_19 : i32 to f32
    %55 = vector.broadcast %54 : f32 to vector<8x128xf32>
    %56 = arith.select %53, %48, %55 : vector<8x128xi1>, vector<8x128xf32>
    %cst_20 = arith.constant dense<0.000000e+00> : vector<8xf32>
    %57 = vector.multi_reduction <add>, %56, %cst_20 [1] : vector<8x128xf32> to vector<8xf32>
    %58 = vector.shape_cast %57 : vector<8xf32> to vector<8x1xf32>
    %59 = vector.broadcast %50 : vector<8x1xf32> to vector<8x128xf32>
    %60 = arith.subf %48, %59 : vector<8x128xf32>
    %61 = math.exp %60 : vector<8x128xf32>
    %cst_21 = arith.constant dense<0.000000e+00> : vector<8xf32>
    %62 = vector.multi_reduction <add>, %61, %cst_21 [1] : vector<8x128xf32> to vector<8xf32>
    %63 = vector.shape_cast %62 : vector<8xf32> to vector<8x1xf32>
    %64 = math.log %63 : vector<8x1xf32>
    %65 = tpu.reciprocal %63 : vector<8x1xf32> -> vector<8x1xf32>
    %66 = arith.mulf %63, %65 : vector<8x1xf32>
    %67 = math.log %66 : vector<8x1xf32>
    %68 = arith.addf %50, %64 : vector<8x1xf32>
    %69 = arith.addf %68, %67 : vector<8x1xf32>
    %70 = arith.subf %69, %58 : vector<8x1xf32>
    %71 = tpu.iota {dimensions = array<i32: 0>} : vector<8x1xi32>
    %72 = vector.broadcast %5 : i32 to vector<8x1xi32>
    %73 = arith.addi %72, %71 : vector<8x1xi32>
    %c8_i32_22 = arith.constant 8 : i32
    %74 = vector.broadcast %c8_i32_22 : i32 to vector<8x1xi32>
    %75 = arith.cmpi slt, %73, %74 : vector<8x1xi32>
    %cst_23 = arith.constant 0.000000e+00 : f32
    %76 = vector.broadcast %cst_23 : f32 to vector<8x1xf32>
    %77 = arith.select %75, %70, %76 : vector<8x1xi1>, vector<8x1xf32>
    %78 = vector.shape_cast %77 : vector<8x1xf32> to vector<1x8x1xf32>
    %cst_24 = arith.constant dense<0.000000e+00> : vector<1xf32>
    %79 = vector.multi_reduction <add>, %78, %cst_24 [1, 2] : vector<1x8x1xf32> to vector<1xf32>
    %80 = vector.shape_cast %79 : vector<1xf32> to vector<1x1x1xf32>
    %81 = vector.extract %80[0, 0, 0] : f32 from vector<1x1x1xf32>
    %82 = vector.broadcast %81 : f32 to vector<1x1xf32>
    %83 = arith.addf %46, %82 : vector<1x1xf32>
    %c0_25 = arith.constant 0 : index
    %c0_26 = arith.constant 0 : index
    %84 = vector.load %arg7[%c0_25, %c0_26] : memref<1x1xf32, #tpu.memory_space<vmem>>, vector<1x1xf32>
    tpu.vector_store %arg7[%c0_25, %c0_26], %83 {strides = array<i32>} : memref<1x1xf32, #tpu.memory_space<vmem>>, vector<1x1xf32>,
    %c0_i32_27 = arith.constant 0 : i32
    %85 = arith.cmpi eq, %arg1, %c0_i32_27 : i32
    %86 = arith.extui %85 : i1 to i32
    %c0_i32_28 = arith.constant 0 : i32
    %87 = arith.cmpi ne, %86, %c0_i32_28 : i32
    scf.if %87 {
      %c0_29 = arith.constant 0 : index
      %c0_30 = arith.constant 0 : index
      %88 = vector.load %arg6[%c0_29, %c0_30] : memref<1x1xf32, #tpu.memory_space<vmem>>, vector<1x1xf32>
      %c0_31 = arith.constant 0 : index
      %c0_32 = arith.constant 0 : index
      %89 = vector.load %arg7[%c0_31, %c0_32] : memref<1x1xf32, #tpu.memory_space<vmem>>, vector<1x1xf32>
      %90 = tpu.concatenate %88, %89 in 1 : vector<1x1xf32>, vector<1x1xf32> -> vector<1x2xf32>
      %c0_33 = arith.constant 0 : index
      %c0_34 = arith.constant 0 : index
      %c0_35 = arith.constant 0 : index
      %91 = vector.load %arg5[%c0_33, %c0_34, %c0_35] : memref<1x1x2xf32, #tpu.memory_space<vmem>>, vector<1x1x2xf32>
      %92 = vector.shape_cast %91 : vector<1x1x2xf32> to vector<1x2xf32>
      %93 = vector.shape_cast %90 : vector<1x2xf32> to vector<1x1x2xf32>
      tpu.vector_store %arg5[%c0_33, %c0_34, %c0_35], %93 {strides = array<i32>} : memref<1x1x2xf32, #tpu.memory_space<vmem>>, vector<1x1x2xf32>,
    } else {
    }
    return
  }
  func.func @transform_0(%arg0: i32, %arg1: i32) -> (i32, i32) {
    %c1_i32 = arith.constant 1 : i32
    %0 = arith.muli %arg0, %c1_i32 : i32
    %1 = arith.addi %0, %arg1 : i32
    %c0_i32 = arith.constant 0 : i32
    %2 = arith.minsi %1, %c0_i32 : i32
    %c0_i32_0 = arith.constant 0 : i32
    %c0_i32_1 = arith.constant 0 : i32
    return %2, %c0_i32_0 : i32, i32
  }
  func.func @transform_1(%arg0: i32, %arg1: i32) -> (i32, i32) {
    %c1_i32 = arith.constant 1 : i32
    %0 = arith.muli %arg0, %c1_i32 : i32
    %1 = arith.addi %0, %arg1 : i32
    %c0_i32 = arith.constant 0 : i32
    %2 = arith.minsi %1, %c0_i32 : i32
    %c0_i32_0 = arith.constant 0 : i32
    %c0_i32_1 = arith.constant 0 : i32
    return %2, %c0_i32_0 : i32, i32
  }
  func.func @transform_2(%arg0: i32, %arg1: i32) -> (i32, i32) {
    %c1_i32 = arith.constant 1 : i32
    %0 = arith.muli %arg0, %c1_i32 : i32
    %1 = arith.addi %0, %arg1 : i32
    %c0_i32 = arith.constant 0 : i32
    %2 = arith.minsi %1, %c0_i32 : i32
    %c0_i32_0 = arith.constant 0 : i32
    %c0_i32_1 = arith.constant 0 : i32
    return %2, %c0_i32_0 : i32, i32
  }
  func.func @transform_3(%arg0: i32, %arg1: i32) -> (i32, i32, i32) {
    %c0_i32 = arith.constant 0 : i32
    %c0_i32_0 = arith.constant 0 : i32
    %c0_i32_1 = arith.constant 0 : i32
    return %arg0, %c0_i32, %c0_i32_0 : i32, i32, i32
  }
}

</mosaic_0001>

<llo_original>
// kernel: tpu_custom_call.1
$region0: #{tpu_custom_call.1}
  #allocation0 [shape = 'u32[]', space=smem, size = 0x4, offset = 0x4, fixed_abs, tag = 'smem constant byte address 0x4 - core index']
  #allocation1 [shape = 'u32[72,128]{1,0:T(1,128)}', space=vmem, size = 0x9000, scoped, tag = 'internal scratch']
  #allocation2 [shape = 'f32[1,1]{1,0:T(1,128)}', space=vmem, size = 0x200, scoped, tag = 'scratch operand']
  #allocation3 [shape = 'f32[1,1]{1,0:T(1,128)}', space=vmem, size = 0x200, scoped, tag = 'scratch operand']
  %s0 = inlined_call_operand.vmem [shape: f32[8,128], index: 0, kind: input, shape index: {}]
  %s1 = inlined_call_operand.hbm [shape: f32[8,128], index: 1, kind: input, shape index: {}]
  %s2 = inlined_call_operand.vmem [shape: s32[8,2], index: 2, kind: input, shape index: {}]
  %s3 = inlined_call_operand.hbm [shape: f32[1,1,2], index: 3, kind: output, shape index: {}]
  %s4 = sld [smem:[#allocation0]]
  $region34: #{tpu_custom_call.1} parent=0
    _
  %s6 = ssub.s32 1, %s4
  %s7 = scalar_select 0, %s6, %s4
  $region1: #{tpu_custom_call.1} parent=0
    #allocation4 [shape = 'u8[4096]{0}', space=vmem, size = 0x1000, scoped, tag = 'input window, operand 1, single buffered']
    #allocation5 [shape = 's32[1]{0}', space=sflag, size = 0x4, scoped, tag = 'scoped memory for tpu_custom_call.1']
    #allocation6 [shape = 's32[1]{0}', space=sflag, size = 0x4, scoped, tag = 'scoped memory for tpu_custom_call.1']
    #allocation7 [shape = 'u8[512]{0}', space=vmem, size = 0x400, scoped, tag = 'output window, operand 0, single buffered']
    %8 = vsyncpa [#allocation5], 0
    %9 = vsyncpa [#allocation6], 0
    // Predicated region
    $region2: #{tpu_custom_call.1} parent=1 // pred_check
      _
    $region3: #{tpu_custom_call.1} parent=1 // pred_check_branch
      %11 = sbr.rel (0) target = $region5
    $region4: #{tpu_custom_call.1} parent=1 // pred_region
      %s12 = sadd.s32 0, 0
      %p13 = scmp.lt.s32.totalorder %s12, 0
      %s14 = scalar_select %p13, %s12, 0
      %p15 = scmp.lt.s32.totalorder %s14, 0
      %s16 = scalar_select %p15, %s14, 0
      %s17 = smul.addr %s16, 8
      %s18 = scalar_lea.vmem %s0, %s17
      %s19 = sadd.s32 0, 0
      %p20 = scmp.lt.s32.totalorder %s19, 0
      %s21 = scalar_select %p20, %s19, 0
    $region5: #{tpu_custom_call.1} parent=1 // pred_fallthru
      _
    // Predicated region
    $region6: #{tpu_custom_call.1} parent=1 // pred_check
      _
    $region7: #{tpu_custom_call.1} parent=1 // pred_check_branch
      %23 = sbr.rel (0) target = $region9
    $region8: #{tpu_custom_call.1} parent=1 // pred_region
      %s24 = sadd.s32 0, 0
      %p25 = scmp.lt.s32.totalorder %s24, 0
      %s26 = scalar_select %p25, %s24, 0
      %28 = vsyncadd [#allocation5], 0
      %s29 = smul.addr %s26, 8
      %s30 = scalar_lea.hbm %s1, %s29
      %s32 = sshll.u32 %s30, 4
      %s33 = int_to_ptr.hbm [resolvable:$true] %s32
      %s34 = sshll.u32 [#allocation4], 4
      %s35 = int_to_ptr.vmem [resolvable:$true] %s34
      %37 = dma.hbm_to_vmem [thread:$0]  %s33, 128, %s35, [#allocation5]
    $region9: #{tpu_custom_call.1} parent=1 // pred_fallthru
      _
    // Predicated region
    $region10: #{tpu_custom_call.1} parent=1 // pred_check
      _
    $region11: #{tpu_custom_call.1} parent=1 // pred_check_branch
      %39 = sbr.rel (0) target = $region13
    $region12: #{tpu_custom_call.1} parent=1 // pred_region
      %s40 = sadd.s32 0, 0
      %p41 = scmp.lt.s32.totalorder %s40, 0
      %s42 = scalar_select %p41, %s40, 0
      %p43 = scmp.lt.s32.totalorder %s42, 0
      %s44 = scalar_select %p43, %s42, 0
      %s45 = smul.addr %s44, 8
      %s46 = scalar_lea.vmem %s2, %s45
      %s47 = sadd.s32 0, 0
      %p48 = scmp.lt.s32.totalorder %s47, 0
      %s49 = scalar_select %p48, %s47, 0
    $region13: #{tpu_custom_call.1} parent=1 // pred_fallthru
      _
    // Predicated region
    $region14: #{tpu_custom_call.1} parent=1 // pred_check
      _
    $region15: #{tpu_custom_call.1} parent=1 // pred_check_branch
      %51 = sbr.rel (0) target = $region17
    $region16: #{tpu_custom_call.1} parent=1 // pred_region
      %53 = dma.done [#allocation5], 128
    $region17: #{tpu_custom_call.1} parent=1 // pred_fallthru
      _
    %s54 = sadd.s32 0, 0
    %p55 = scmp.lt.s32.totalorder %s54, 0
    %s56 = scalar_select %p55, %s54, 0
    %p57 = scmp.lt.s32.totalorder %s56, 0
    %s58 = scalar_select %p57, %s56, 0
    %s59 = smul.addr %s58, 8
    %s60 = scalar_lea.vmem %s0, %s59
    %s61 = sadd.s32 0, 0
    %p62 = scmp.lt.s32.totalorder %s61, 0
    %s63 = scalar_select %p62, %s61, 0
    %p64 = scmp.lt.s32.totalorder %s63, 0
    %s65 = scalar_select %p64, %s63, 0
    %s66 = smul.addr %s65, 8
    %s67 = scalar_lea.vmem %s2, %s66
    %s68 = sadd.s32 0, 0
    %p69 = scmp.lt.s32.totalorder %s68, 0
    %s70 = scalar_select %p69, %s68, 0
    %p71 = scmp.lt.s32.totalorder %s70, 0
    %s72 = scalar_select %p71, %s70, 0
    %s73 = smul.addr %s72, 8
    %s74 = scalar_lea.vmem %s0, %s73
    %s75 = sadd.s32 0, 0
    %p76 = scmp.lt.s32.totalorder %s75, 0
    %s77 = scalar_select %p76, %s75, 0
    %s78 = sadd.s32 0, 0
    %p79 = scmp.lt.s32.totalorder %s78, 0
    %s80 = scalar_select %p79, %s78, 0
    %s81 = sadd.s32 0, 0
    %p82 = scmp.lt.s32.totalorder %s81, 0
    %s83 = scalar_select %p82, %s81, 0
    %p84 = scmp.lt.s32.totalorder %s83, 0
    %s85 = scalar_select %p84, %s83, 0
    %s86 = smul.addr %s85, 8
    %s87 = scalar_lea.vmem %s2, %s86
    %s88 = sadd.s32 0, 0
    %p89 = scmp.lt.s32.totalorder %s88, 0
    %s90 = scalar_select %p89, %s88, 0
    %p91 = scmp.eq.s32.totalorder 0, 0
    // Predicated region
    $region18: #{tpu_custom_call.1} parent=1 // pred_check
      %p92 = pneg %p91
    $region19: #{tpu_custom_call.1} parent=1 // pred_check_branch
      %94 = sbr.rel (%p92) target = $region21
    $region20: #{tpu_custom_call.1} parent=1 // pred_region
      %vm95 = vcmask 0
      %96 = vst.msk [vmem:[#allocation2] sm:$0x1] %vm95, 0.0
      %97 = vst.msk [vmem:[#allocation3] sm:$0x1] %vm95, 0.0
    $region21: #{tpu_custom_call.1} parent=1 // pred_fallthru
      _
    %s98 = sadd.s32 0, 0
    %s99 = smul.u32 %s98, 8
    %v100 = vld [vmem:[%s87] sm:$0xff]
    %v101 = vld [vmem:[#allocation2] sm:$0x1]
    %v102 = vld [vmem:[%s74] sm:$0xff]
    %103 = vmax.xlane.f32.xlu0 %v102
    %v104 = vpop.xlane.xlu0 %103
    %v105 = vlaneseq
    %v106 = vand.u32 %v105, 127
    %107 = vset.pattern.permute.xlu0 0
    %108 = vperm.xlu0 %107, %v100
    %v109 = vpop.permute.xlu0 %108
    %vm110 = vcmp.eq.s32.totalorder %v106, %v109
    %v111 = vsel %vm110, %v102, 0.0
    %112 = vadd.xlane.f32.xlu0 %v111
    %v113 = vpop.xlane.xlu0 %112
    %v114 = vsub.f32 %v102, %v104
    %v115 = vmul.f32 %v114, 1.442695
    %v116 = vpow.pop %v115
    %117 = vadd.xlane.f32.xlu0 %v116
    %v118 = vpop.xlane.xlu0 %117
    %v119 = vlog2.pop %v118
    %v120 = vmul.f32 %v119, 0.6931472
    %v121 = vrcp.pop %v118
    %v122 = vmul.f32 %v118, %v121
    %v123 = vsub.f32 1.0, %v122
    %v124 = vmul.f32 %v121, %v123
    %v125 = vadd.f32 %v121, %v124
    %vm126 = vweird.f32 %v118
    %vm127 = vweird.f32 %v121
    %vm128 = vmor %vm126, %vm127
    %v129 = vsel %vm128, %v121, %v125
    %v130 = vand.u32 2147483647, %v118
    %vm131 = vcmp.eq.f32.partialorder %v130, 8.507059e+37
    %v132 = vand.u32 %v118, 2147483648
    %v133 = vor.u32 1.1754944e-38, %v132
    %v134 = vsel %vm131, %v133, %v129
    %v135 = vmul.f32 %v118, %v134
    %v136 = vlog2.pop %v135
    %v137 = vmul.f32 %v136, 0.6931472
    %v138 = vadd.f32 %v104, %v120
    %v139 = vadd.f32 %v138, %v137
    %v140 = vsub.f32 %v139, %v113
    %v141 = vlaneseq
    %v142 = vshrl.u32 %v141, 7
    %v143 = vstv %s99
    %v144 = vadd.s32 %v143, %v142
    %vm145 = vcmp.lt.s32.totalorder %v144, 8
    %v146 = vsel %vm145, %v140, 0.0
    %vm147 = vcmask 7168
    %v148 = vsel %vm147, %v146, 0.0
    %149 = vadd.xlane.f32.xlu0 %v148
    %v150 = vpop.xlane.xlu0 %149
    %v151 = vrot.slane %v150, 4
    %v152 = vadd.f32 %v150, %v151
    %v153 = vrot.slane %v152, 2
    %v154 = vadd.f32 %v152, %v153
    %v155 = vrot.slane %v154, 1
    %v156 = vadd.f32 %v154, %v155
    %s157 = vtos %v156
    %v158 = vstv %s157
    %v159 = vadd.f32 %v101, %v158
    %vm160 = vcmask 0
    %161 = vst.msk [vmem:[#allocation2] sm:$0x1] %vm160, %v159
    %v162 = vld [vmem:[#allocation3] sm:$0x1]
    %v163 = vld [vmem:[#allocation4] sm:$0xff]
    %164 = vmax.xlane.f32.xlu0 %v163
    %v165 = vpop.xlane.xlu0 %164
    %166 = vset.pattern.permute.xlu0 1
    %167 = vperm.xlu0 %166, %v100
    %v168 = vpop.permute.xlu0 %167
    %vm169 = vcmp.eq.s32.totalorder %v106, %v168
    %v170 = vsel %vm169, %v163, 0.0
    %171 = vadd.xlane.f32.xlu0 %v170
    %v172 = vpop.xlane.xlu0 %171
    %v173 = vsub.f32 %v163, %v165
    %v174 = vmul.f32 %v173, 1.442695
    %v175 = vpow.pop %v174
    %176 = vadd.xlane.f32.xlu0 %v175
    %v177 = vpop.xlane.xlu0 %176
    %v178 = vlog2.pop %v177
    %v179 = vmul.f32 %v178, 0.6931472
    %v180 = vrcp.pop %v177
    %v181 = vmul.f32 %v177, %v180
    %v182 = vsub.f32 1.0, %v181
    %v183 = vmul.f32 %v180, %v182
    %v184 = vadd.f32 %v180, %v183
    %vm185 = vweird.f32 %v177
    %vm186 = vweird.f32 %v180
    %vm187 = vmor %vm185, %vm186
    %v188 = vsel %vm187, %v180, %v184
    %v189 = vand.u32 2147483647, %v177
    %vm190 = vcmp.eq.f32.partialorder %v189, 8.507059e+37
    %v191 = vand.u32 %v177, 2147483648
    %v192 = vor.u32 1.1754944e-38, %v191
    %v193 = vsel %vm190, %v192, %v188
    %v194 = vmul.f32 %v177, %v193
    %v195 = vlog2.pop %v194
    %v196 = vmul.f32 %v195, 0.6931472
    %v197 = vadd.f32 %v165, %v179
    %v198 = vadd.f32 %v197, %v196
    %v199 = vsub.f32 %v198, %v172
    %v200 = vsel %vm145, %v199, 0.0
    %v201 = vsel %vm147, %v200, 0.0
    %202 = vadd.xlane.f32.xlu0 %v201
    %v203 = vpop.xlane.xlu0 %202
    %v204 = vrot.slane %v203, 4
    %v205 = vadd.f32 %v203, %v204
    %v206 = vrot.slane %v205, 2
    %v207 = vadd.f32 %v205, %v206
    %v208 = vrot.slane %v207, 1
    %v209 = vadd.f32 %v207, %v208
    %s210 = vtos %v209
    %v211 = vstv %s210
    %v212 = vadd.f32 %v162, %v211
    %213 = vst.msk [vmem:[#allocation3] sm:$0x1] %vm160, %v212
    // Predicated region
    $region22: #{tpu_custom_call.1} parent=1 // pred_check
      %p214 = pneg %p91
    $region23: #{tpu_custom_call.1} parent=1 // pred_check_branch
      %216 = sbr.rel (%p214) target = $region25
    $region24: #{tpu_custom_call.1} parent=1 // pred_region
      %v217 = vld [vmem:[#allocation2] sm:$0x1]
      %v218 = vld [vmem:[#allocation3] sm:$0x1]
      %v220 = vperm.slane %v218, 0
      %221 = vrot.lane.b32.xlu0 %v220, 1
      %v222 = vpop.permute.xlu0 %221
      %v224 = vsel %vm147, %v217, %v222
      %vm225 = vcmask 8192
      %226 = vst.msk [vmem:[#allocation7] sm:$0x1] %vm225, %v224
    $region25: #{tpu_custom_call.1} parent=1 // pred_fallthru
      _
    // Predicated region
    $region26: #{tpu_custom_call.1} parent=1 // pred_check
      _
    $region27: #{tpu_custom_call.1} parent=1 // pred_check_branch
      %228 = sbr.rel (0) target = $region29
    $region28: #{tpu_custom_call.1} parent=1 // pred_region
      %230 = vsyncadd [#allocation6], 0
      %s232 = sshll.u32 [#allocation7], 4
      %s233 = int_to_ptr.vmem [resolvable:$true] %s232
      %s234 = sshll.u32 %s3, 4
      %s235 = int_to_ptr.hbm [resolvable:$true] %s234
      %237 = dma.vmem_to_hbm [thread:$0]  %s233, 16, %s235, [#allocation6]
    $region29: #{tpu_custom_call.1} parent=1 // pred_fallthru
      _
    // Predicated region
    $region30: #{tpu_custom_call.1} parent=1 // pred_check
      _
    $region31: #{tpu_custom_call.1} parent=1 // pred_check_branch
      %239 = sbr.rel (0) target = $region33
    $region32: #{tpu_custom_call.1} parent=1 // pred_region
      %241 = dma.done [#allocation6], 16
    $region33: #{tpu_custom_call.1} parent=1 // pred_fallthru
      _
    %242 = vsyncpa [#allocation5], 1
    %243 = vsyncpa [#allocation6], 1

</llo_original>
